<compile_context>
chip_gen: v7x
topology: tpu7x:2x2x1
jax: 0.10.0
libtpu: 0.0.40
codegen_flags: <defaults>
</compile_context>

<pallas_src>
import jax
import jax.numpy as jnp
from jax.experimental import pallas as pl
from jax.experimental.pallas import tpu as pltpu


def qnet_kernel(x_ref, w1_ref, b1_ref, w2_ref, b2_ref, out_ref):
    # fc1: cast x to bf16 in-kernel (VPU), MXU matmul with f32 accumulation,
    # bias + ReLU on the VPU in f32.
    x = x_ref[...].astype(jnp.bfloat16)                               # (tb, S)
    h = jnp.dot(x, w1_ref[...], preferred_element_type=jnp.float32)   # (tb, H)
    h = jnp.maximum(h + b1_ref[...], 0.0)
    # fc2: activations back to bf16 for the MXU, accumulate in f32.
    o = jnp.dot(h.astype(jnp.bfloat16), w2_ref[...],
                preferred_element_type=jnp.float32)                   # (tb, A_pad)
    o = o + b2_ref[...]
    # Transposed store: (A_pad, tb) -> only A_pad (=8) live sublane rows, batch
    # on lanes.  The small transpose goes to the XLU (idle in this kernel).
    out_ref[...] = o.T.astype(out_ref.dtype)


def prepare_qnet_params(w1, b1, w2, b2):
    """One-time parameter prep (call at init / target-net sync, not per step).

    w1: (S, H), b1: (H,) or (1, H), w2: (H, A), b2: (A,) or (1, A) — weights in
    (in, out) layout, i.e. transposed vs. PyTorch's Linear.weight.
    """
    S, H = w1.shape
    A = w2.shape[1]
    a_pad = max(8, ((A + 7) // 8) * 8)   # f32 sublane-aligned output rows
    return {
        "w1": w1.astype(jnp.bfloat16),                                   # (S, H)
        "b1": jnp.reshape(b1, (1, H)).astype(jnp.float32),               # (1, H)
        "w2": jnp.pad(w2, ((0, 0), (0, a_pad - A))).astype(jnp.bfloat16),# (H, A_pad)
        "b2": jnp.pad(jnp.reshape(b2, (1, A)),
                      ((0, 0), (0, a_pad - A))).astype(jnp.float32),     # (1, A_pad)
        "action_dim": A,
    }


def _plan_batch_tiles(B, max_tile=2048, single_tile_max=512):
    """Pick (tile_rows, n_tiles). Single tile (no constraints / no padding) for
    small batches; otherwise an even number of balanced tiles whose size is a
    multiple of 128 (lane dim of the transposed output)."""
    if B <= single_tile_max:
        return B, 1
    n_tiles = max(2, pl.cdiv(B, max_tile))
    if n_tiles % 2:            # balance across v7x's 2 TensorCores
        n_tiles += 1
    tb = ((pl.cdiv(B, n_tiles) + 127) // 128) * 128
    n_tiles = pl.cdiv(B, tb)
    return tb, n_tiles


def qnet_forward(x, params, *, max_batch_tile=2048):
    """x: (B, S) float32; params from prepare_qnet_params. Returns (B, A) f32."""
    B, S = x.shape
    w1, b1, w2, b2 = params["w1"], params["b1"], params["w2"], params["b2"]
    A = params["action_dim"]
    H = w1.shape[1]
    A_pad = w2.shape[1]

    tb, n_tiles = _plan_batch_tiles(B, max_batch_tile)

    out_t = pl.pallas_call(
        qnet_kernel,
        out_shape=jax.ShapeDtypeStruct((A_pad, B), jnp.float32),
        grid=(n_tiles,),
        in_specs=[
            pl.BlockSpec((tb, S), lambda i: (i, 0)),        # x tile per step
            pl.BlockSpec((S, H), lambda i: (0, 0)),         # weights stay VMEM-resident
            pl.BlockSpec((1, H), lambda i: (0, 0)),
            pl.BlockSpec((H, A_pad), lambda i: (0, 0)),
            pl.BlockSpec((1, A_pad), lambda i: (0, 0)),
        ],
        out_specs=pl.BlockSpec((A_pad, tb), lambda i: (0, i)),
        compiler_params=pltpu.CompilerParams(
            dimension_semantics=("parallel",)),
    )(x, w1, b1, w2, b2)

    # Undo the lane-dense transposed layout and drop padded action rows.
    return out_t[:A, :].T


def qnet_reference(x, w1, b1, w2, b2):
    h = jnp.maximum(x @ w1 + b1, 0.0)
    return h @ w2 + b2


if __name__ == "__main__":
    # CartPole-like shapes: state_dim=4, hidden_dim=32, action_dim=2.
    B, S, H, A = 8, 4, 32, 2

    key = jax.random.PRNGKey(0)
    kx, kw1, kb1, kw2, kb2, kx2 = jax.random.split(key, 6)

    x = jax.random.normal(kx, (B, S), dtype=jnp.float32)

    # Deterministic init mimicking torch.nn.Linear's U(-1/sqrt(fan_in), ...).
    # Weights stored as (in, out) = transposed PyTorch layout.
    bound1 = 1.0 / (S ** 0.5)
    w1 = jax.random.uniform(kw1, (S, H), jnp.float32, -bound1, bound1)
    b1 = jax.random.uniform(kb1, (H,), jnp.float32, -bound1, bound1)
    bound2 = 1.0 / (H ** 0.5)
    w2 = jax.random.uniform(kw2, (H, A), jnp.float32, -bound2, bound2)
    b2 = jax.random.uniform(kb2, (A,), jnp.float32, -bound2, bound2)

    # One-time parameter conversion (outside the per-step forward path).
    params = prepare_qnet_params(w1, b1, w2, b2)

    # Small-batch check (single grid step, no padding anywhere).
    out = jax.block_until_ready(qnet_forward(x, params))
    ref = qnet_reference(x, w1, b1, w2, b2)
    assert out.shape == (B, A)
    # bf16 MXU inputs => loosened tolerance vs. the f32 reference.
    assert jnp.allclose(out, ref, atol=5e-2, rtol=5e-2), float(
        jnp.max(jnp.abs(out - ref)))

    # Replay-buffer-like batch: exercises the multi-tile grid, ragged boundary
    # block handling, and the transposed lane-dense output path.
    B2 = 1000
    x2 = jax.random.normal(kx2, (B2, S), dtype=jnp.float32)
    out2 = jax.block_until_ready(qnet_forward(x2, params))
    ref2 = qnet_reference(x2, w1, b1, w2, b2)
    assert out2.shape == (B2, A)
    assert jnp.allclose(out2, ref2, atol=5e-2, rtol=5e-2), float(
        jnp.max(jnp.abs(out2 - ref2)))

    print("KERNEL_OK")
</pallas_src>

<mosaic_0001>
module attributes {stable_mosaic.version = 11 : i64} {
  func.func @qnet_kernel(%arg0: i32, %arg1: memref<8x4xf32, #tpu.memory_space<vmem>>, %arg2: memref<4x32xbf16, #tpu.memory_space<vmem>>, %arg3: memref<1x32xf32, #tpu.memory_space<vmem>>, %arg4: memref<32x8xbf16, #tpu.memory_space<vmem>>, %arg5: memref<1x8xf32, #tpu.memory_space<vmem>>, %arg6: memref<8x8xf32, #tpu.memory_space<vmem>>) attributes {dimension_semantics = [#tpu.dimension_semantics<parallel>], iteration_bounds = array<i64: 1>, scalar_prefetch = 0 : i64, scratch_operands = 0 : i64, tpu.core_type = #tpu.core_type<tc>, window_params = [{transform_indices = @transform_0, window_bounds = array<i64: 8, 4>}, {pipeline_mode = #tpu.pipeline_mode<synchronous>, transform_indices = @transform_1, window_bounds = array<i64: 4, 32>}, {pipeline_mode = #tpu.pipeline_mode<synchronous>, transform_indices = @transform_2, window_bounds = array<i64: 1, 32>}, {pipeline_mode = #tpu.pipeline_mode<synchronous>, transform_indices = @transform_3, window_bounds = array<i64: 32, 8>}, {pipeline_mode = #tpu.pipeline_mode<synchronous>, transform_indices = @transform_4, window_bounds = array<i64: 1, 8>}, {transform_indices = @transform_5, window_bounds = array<i64: 8, 8>}]} {
    %c0 = arith.constant 0 : index
    %c0_0 = arith.constant 0 : index
    %0 = vector.load %arg1[%c0, %c0_0] : memref<8x4xf32, #tpu.memory_space<vmem>>, vector<8x4xf32>
    %1 = arith.truncf %0 : vector<8x4xf32> to vector<8x4xbf16>
    %c0_1 = arith.constant 0 : index
    %c0_2 = arith.constant 0 : index
    %2 = vector.load %arg2[%c0_1, %c0_2] : memref<4x32xbf16, #tpu.memory_space<vmem>>, vector<4x32xbf16>
    %cst = arith.constant dense<0.000000e+00> : vector<8x32xf32>
    %3 = tpu.matmul %1, %2, %cst {dimension_numbers = #tpu.dot_dimension_numbers<[1], [0], [0], [1], [0, 0, 1, 1], [], []>} : vector<8x4xbf16>, vector<4x32xbf16>, vector<8x32xf32> -> vector<8x32xf32>
    %c0_3 = arith.constant 0 : index
    %c0_4 = arith.constant 0 : index
    %4 = vector.load %arg3[%c0_3, %c0_4] : memref<1x32xf32, #tpu.memory_space<vmem>>, vector<1x32xf32>
    %5 = vector.broadcast %4 : vector<1x32xf32> to vector<8x32xf32>
    %6 = arith.addf %3, %5 : vector<8x32xf32>
    %cst_5 = arith.constant 0.000000e+00 : f32
    %7 = vector.broadcast %cst_5 : f32 to vector<8x32xf32>
    %8 = arith.maximumf %6, %7 : vector<8x32xf32>
    %9 = arith.truncf %8 : vector<8x32xf32> to vector<8x32xbf16>
    %c0_6 = arith.constant 0 : index
    %c0_7 = arith.constant 0 : index
    %10 = vector.load %arg4[%c0_6, %c0_7] : memref<32x8xbf16, #tpu.memory_space<vmem>>, vector<32x8xbf16>
    %cst_8 = arith.constant dense<0.000000e+00> : vector<8x8xf32>
    %11 = tpu.matmul %9, %10, %cst_8 {dimension_numbers = #tpu.dot_dimension_numbers<[1], [0], [0], [1], [0, 0, 1, 1], [], []>} : vector<8x32xbf16>, vector<32x8xbf16>, vector<8x8xf32> -> vector<8x8xf32>
    %c0_9 = arith.constant 0 : index
    %c0_10 = arith.constant 0 : index
    %12 = vector.load %arg5[%c0_9, %c0_10] : memref<1x8xf32, #tpu.memory_space<vmem>>, vector<1x8xf32>
    %13 = vector.broadcast %12 : vector<1x8xf32> to vector<8x8xf32>
    %14 = arith.addf %11, %13 : vector<8x8xf32>
    %15 = tpu.transpose %14, [1, 0] : vector<8x8xf32> -> vector<8x8xf32>
    %c0_11 = arith.constant 0 : index
    %c0_12 = arith.constant 0 : index
    %16 = vector.load %arg6[%c0_11, %c0_12] : memref<8x8xf32, #tpu.memory_space<vmem>>, vector<8x8xf32>
    tpu.vector_store %arg6[%c0_11, %c0_12], %15 {strides = array<i32>} : memref<8x8xf32, #tpu.memory_space<vmem>>, vector<8x8xf32>,
    return
  }
  func.func @transform_0(%arg0: i32) -> (i32, i32) {
    %c0_i32 = arith.constant 0 : i32
    %c0_i32_0 = arith.constant 0 : i32
    return %arg0, %c0_i32 : i32, i32
  }
  func.func @transform_1(%arg0: i32) -> (i32, i32) {
    %c0_i32 = arith.constant 0 : i32
    %c0_i32_0 = arith.constant 0 : i32
    %c0_i32_1 = arith.constant 0 : i32
    return %c0_i32, %c0_i32_0 : i32, i32
  }
  func.func @transform_2(%arg0: i32) -> (i32, i32) {
    %c0_i32 = arith.constant 0 : i32
    %c0_i32_0 = arith.constant 0 : i32
    %c0_i32_1 = arith.constant 0 : i32
    return %c0_i32, %c0_i32_0 : i32, i32
  }
  func.func @transform_3(%arg0: i32) -> (i32, i32) {
    %c0_i32 = arith.constant 0 : i32
    %c0_i32_0 = arith.constant 0 : i32
    %c0_i32_1 = arith.constant 0 : i32
    return %c0_i32, %c0_i32_0 : i32, i32
  }
  func.func @transform_4(%arg0: i32) -> (i32, i32) {
    %c0_i32 = arith.constant 0 : i32
    %c0_i32_0 = arith.constant 0 : i32
    %c0_i32_1 = arith.constant 0 : i32
    return %c0_i32, %c0_i32_0 : i32, i32
  }
  func.func @transform_5(%arg0: i32) -> (i32, i32) {
    %c0_i32 = arith.constant 0 : i32
    %c0_i32_0 = arith.constant 0 : i32
    return %c0_i32, %arg0 : i32, i32
  }
}

</mosaic_0001>

<llo_original>
// kernel: tpu_custom_call.1
$region0: #{tpu_custom_call.1}
  #allocation0 [shape = 'u32[]', space=smem, size = 0x4, offset = 0x4, fixed_abs, tag = 'smem constant byte address 0x4 - core index']
  #allocation1 [shape = 'u32[144,128]{1,0:T(1,128)}', space=vmem, size = 0x12000, scoped, tag = 'internal scratch']
  %s0 = inlined_call_operand.vmem [shape: f32[8,4], index: 0, kind: input, shape index: {}]
  %s1 = inlined_call_operand.vmem [shape: bf16[4,32], index: 1, kind: input, shape index: {}]
  %s2 = inlined_call_operand.vmem [shape: f32[1,32], index: 2, kind: input, shape index: {}]
  %s3 = inlined_call_operand.vmem [shape: bf16[32,8], index: 3, kind: input, shape index: {}]
  %s4 = inlined_call_operand.vmem [shape: f32[1,8], index: 4, kind: input, shape index: {}]
  %s5 = inlined_call_operand.hbm [shape: f32[8,8], index: 5, kind: output, shape index: {}]
  %s6 = sld [smem:[#allocation0]]
  $region30: #{tpu_custom_call.1} parent=0
    _
  %s8 = ssub.s32 1, %s6
  %s9 = scalar_select 0, %s8, %s6
  $region1: #{tpu_custom_call.1} parent=0
    #allocation2 [shape = 'u8[4096]{0}', space=vmem, size = 0x1000, scoped, tag = 'output window, operand 0, single buffered']
    #allocation3 [shape = 's32[1]{0}', space=sflag, size = 0x4, scoped, tag = 'scoped memory for tpu_custom_call.1']
    %10 = vsyncpa [#allocation3], 0
    // Predicated region
    $region2: #{tpu_custom_call.1} parent=1 // pred_check
      _
    $region3: #{tpu_custom_call.1} parent=1 // pred_check_branch
      %12 = sbr.rel (0) target = $region5
    $region4: #{tpu_custom_call.1} parent=1 // pred_region
      _
    $region5: #{tpu_custom_call.1} parent=1 // pred_fallthru
      _
    // Predicated region
    $region6: #{tpu_custom_call.1} parent=1 // pred_check
      _
    $region7: #{tpu_custom_call.1} parent=1 // pred_check_branch
      %14 = sbr.rel (0) target = $region9
    $region8: #{tpu_custom_call.1} parent=1 // pred_region
      _
    $region9: #{tpu_custom_call.1} parent=1 // pred_fallthru
      _
    // Predicated region
    $region10: #{tpu_custom_call.1} parent=1 // pred_check
      _
    $region11: #{tpu_custom_call.1} parent=1 // pred_check_branch
      %16 = sbr.rel (0) target = $region13
    $region12: #{tpu_custom_call.1} parent=1 // pred_region
      _
    $region13: #{tpu_custom_call.1} parent=1 // pred_fallthru
      _
    // Predicated region
    $region14: #{tpu_custom_call.1} parent=1 // pred_check
      _
    $region15: #{tpu_custom_call.1} parent=1 // pred_check_branch
      %18 = sbr.rel (0) target = $region17
    $region16: #{tpu_custom_call.1} parent=1 // pred_region
      _
    $region17: #{tpu_custom_call.1} parent=1 // pred_fallthru
      _
    // Predicated region
    $region18: #{tpu_custom_call.1} parent=1 // pred_check
      _
    $region19: #{tpu_custom_call.1} parent=1 // pred_check_branch
      %20 = sbr.rel (0) target = $region21
    $region20: #{tpu_custom_call.1} parent=1 // pred_region
      _
    $region21: #{tpu_custom_call.1} parent=1 // pred_fallthru
      _
    %v22 = vld [vmem:[%s0] sm:$0xff]
    %v23 = vpack.c.bf16 %v22, %v22
    %v24 = vld [vmem:[%s1] sm:$0x3]
    %v25 = vld [vmem:[%s2] sm:$0x1]
    %v27 = vlaneseq
    %v28 = vshrl.u32 %v27, 7
    %v29 = vsub.s32 0, %v28
    %v30 = vrot.slane %v25, %v29
    %vm32 = vcmask 31744
    %v34 = vsel %vm32, %v23, 0
    %vm36 = vcmask 1041408
    %v38 = vsel %vm36, %v24, 0
    %40 = vmatprep.subr.bf16.mxu0 0
    %41 = vmatpush1.bf16.msra.mxu0 %v38
    %42 = vmatprep.subr.bf16.mxu0 0
    %43 = vmatpush1.bf16.msra.mxu0 0
    %44 = vmatprep.subr.bf16.mxu0 0
    %45 = vmatpush1.bf16.msra.mxu0 0
    %46 = vmatprep.subr.bf16.mxu0 0
    %47 = vmatpush1.bf16.msra.mxu0 0
    %48 = vmatprep.subr.bf16.mxu0 0
    %49 = vmatpush1.bf16.msra.mxu0 0
    %50 = vmatprep.subr.bf16.mxu0 0
    %51 = vmatpush1.bf16.msra.mxu0 0
    %52 = vmatprep.subr.bf16.mxu0 0
    %53 = vmatpush1.bf16.msra.mxu0 0
    %54 = vmatprep.subr.bf16.mxu0 0
    %55 = vmatpush1.bf16.msra.mxu0 0
    %56 = vmatprep.subr.bf16.mxu0 0
    %57 = vmatpush1.bf16.msra.mxu0 0
    %58 = vmatprep.subr.bf16.mxu0 0
    %59 = vmatpush1.bf16.msra.mxu0 0
    %60 = vmatprep.subr.bf16.mxu0 0
    %61 = vmatpush1.bf16.msra.mxu0 0
    %62 = vmatprep.subr.bf16.mxu0 0
    %63 = vmatpush1.bf16.msra.mxu0 0
    %64 = vmatprep.subr.bf16.mxu0 0
    %65 = vmatpush1.bf16.msra.mxu0 0
    %66 = vmatprep.subr.bf16.mxu0 0
    %67 = vmatpush1.bf16.msra.mxu0 0
    %68 = vmatprep.subr.bf16.mxu0 0
    %69 = vmatpush1.bf16.msra.mxu0 0
    %70 = vmatprep.subr.bf16.mxu0 0
    %71 = vmatpush1.bf16.msra.mxu0 0
    %72 = vmatprep.mubr.bf16.mxu0 0
    %73 = vmatmul.mubr.bf16.gmra.mrb[0].mxu0 %v34
    %v74 = vpop.f32.mrb[0].mxu0
    %v75 = vadd.f32 %v30, %v74
    %v76 = vpop.f32.mrb[0].mxu0
    %v77 = vpop.f32.mrb[0].mxu0
    %v78 = vpop.f32.mrb[0].mxu0
    %79 = vdwg.mxu0
    %v80 = vmax.f32 %v75, 0.0
    %v81 = vpack.c.bf16 %v80, %v80
    %v82 = vld [vmem:[%s3] sm:$0xf]
    %v83 = vld [vmem:[%s3 + $0x4] sm:$0xf]
    %v84 = vld [vmem:[%s3 + $0x8] sm:$0xf]
    %v85 = vld [vmem:[%s3 + $0xc] sm:$0xf]
    %v86 = vld [vmem:[%s4] sm:$0x1]
    %v88 = vlaneseq
    %v89 = vshrl.u32 %v88, 7
    %v90 = vsub.s32 0, %v89
    %v91 = vrot.slane %v86, %v90
    %v97 = vunpack.c.l.b16 %v82
    %v98 = vunpack.c.l.b16 %v83
    %v99 = vunpack.c.l.b16 %v84
    %v100 = vunpack.c.l.b16 %v85
    %v101 = vpack.c.b16 %v98, %v97
    %v102 = vpack.c.b16 %v100, %v99
    %vm105 = vcmask 261120
    %v107 = vsel %vm105, %v81, 0
    %109 = vmatprep.subr.bf16.mxu0 0
    %110 = vmatpush1.bf16.msra.mxu0 %v101
    %111 = vmatprep.subr.bf16.mxu0 0
    %112 = vmatpush1.bf16.msra.mxu0 %v102
    %113 = vmatprep.subr.bf16.mxu0 0
    %114 = vmatpush1.bf16.msra.mxu0 0
    %115 = vmatprep.subr.bf16.mxu0 0
    %116 = vmatpush1.bf16.msra.mxu0 0
    %117 = vmatprep.subr.bf16.mxu0 0
    %118 = vmatpush1.bf16.msra.mxu0 0
    %119 = vmatprep.subr.bf16.mxu0 0
    %120 = vmatpush1.bf16.msra.mxu0 0
    %121 = vmatprep.subr.bf16.mxu0 0
    %122 = vmatpush1.bf16.msra.mxu0 0
    %123 = vmatprep.subr.bf16.mxu0 0
    %124 = vmatpush1.bf16.msra.mxu0 0
    %125 = vmatprep.subr.bf16.mxu0 0
    %126 = vmatpush1.bf16.msra.mxu0 0
    %127 = vmatprep.subr.bf16.mxu0 0
    %128 = vmatpush1.bf16.msra.mxu0 0
    %129 = vmatprep.subr.bf16.mxu0 0
    %130 = vmatpush1.bf16.msra.mxu0 0
    %131 = vmatprep.subr.bf16.mxu0 0
    %132 = vmatpush1.bf16.msra.mxu0 0
    %133 = vmatprep.subr.bf16.mxu0 0
    %134 = vmatpush1.bf16.msra.mxu0 0
    %135 = vmatprep.subr.bf16.mxu0 0
    %136 = vmatpush1.bf16.msra.mxu0 0
    %137 = vmatprep.subr.bf16.mxu0 0
    %138 = vmatpush1.bf16.msra.mxu0 0
    %139 = vmatprep.subr.bf16.mxu0 0
    %140 = vmatpush1.bf16.msra.mxu0 0
    %141 = vmatprep.mubr.bf16.mxu0 0
    %142 = vmatmul.mubr.bf16.gmra.mrb[0].mxu0 %v107
    %v143 = vpop.f32.mrb[0].mxu0
    %v144 = vadd.f32 %v91, %v143
    %v145 = vpop.f32.mrb[0].mxu0
    %v146 = vpop.f32.mrb[0].mxu0
    %v147 = vpop.f32.mrb[0].mxu0
    %148 = vdwg.mxu0
    %149 = vxpose.xlu0.b32.start [1/16] %v144, 128
    %150 = vxpose.xlu0.b32.cont [2/16] 0.0, 128
    %151 = vxpose.xlu0.b32.cont [3/16] 0.0, 128
    %152 = vxpose.xlu0.b32.cont [4/16] 0.0, 128
    %153 = vxpose.xlu0.b32.cont [5/16] 0.0, 128
    %154 = vxpose.xlu0.b32.cont [6/16] 0.0, 128
    %155 = vxpose.xlu0.b32.cont [7/16] 0.0, 128
    %156 = vxpose.xlu0.b32.cont [8/16] 0.0, 128
    %157 = vxpose.xlu0.b32.cont [9/16] 0.0, 128
    %158 = vxpose.xlu0.b32.cont [10/16] 0.0, 128
    %159 = vxpose.xlu0.b32.cont [11/16] 0.0, 128
    %160 = vxpose.xlu0.b32.cont [12/16] 0.0, 128
    %161 = vxpose.xlu0.b32.cont [13/16] 0.0, 128
    %162 = vxpose.xlu0.b32.cont [14/16] 0.0, 128
    %163 = vxpose.xlu0.b32.cont [15/16] 0.0, 128
    %164 = vxpose.xlu0.b32.end [16/16] 0.0, 128
    %v165 = vpop.trf.xlu0
    %v166 = vpop.trf.xlu0
    %v167 = vpop.trf.xlu0
    %v168 = vpop.trf.xlu0
    %v169 = vpop.trf.xlu0
    %v170 = vpop.trf.xlu0
    %v171 = vpop.trf.xlu0
    %v172 = vpop.trf.xlu0
    %v173 = vpop.trf.xlu0
    %v174 = vpop.trf.xlu0
    %v175 = vpop.trf.xlu0
    %v176 = vpop.trf.xlu0
    %v177 = vpop.trf.xlu0
    %v178 = vpop.trf.xlu0
    %v179 = vpop.trf.xlu0
    %v180 = vpop.trf.xlu0
    %vm181 = vcmask 64512
    %182 = vst.msk [vmem:[#allocation2] sm:$0xff] %vm181, %v165
    // Predicated region
    $region22: #{tpu_custom_call.1} parent=1 // pred_check
      _
    $region23: #{tpu_custom_call.1} parent=1 // pred_check_branch
      %184 = sbr.rel (0) target = $region25
    $region24: #{tpu_custom_call.1} parent=1 // pred_region
      %s186 = ssub.s32 128, 128
      %187 = vsyncadd [#allocation3], %s186
      %s189 = sshll.u32 [#allocation2], 4
      %s190 = int_to_ptr.vmem [resolvable:$true] %s189
      %192 = dma.vmem_to_hbm [thread:$0]  %s190, 128, %s5, [#allocation3]
    $region25: #{tpu_custom_call.1} parent=1 // pred_fallthru
      _
    // Predicated region
    $region26: #{tpu_custom_call.1} parent=1 // pred_check
      _
    $region27: #{tpu_custom_call.1} parent=1 // pred_check_branch
      %194 = sbr.rel (0) target = $region29
    $region28: #{tpu_custom_call.1} parent=1 // pred_region
      %195 = dma.done [#allocation3], 128
    $region29: #{tpu_custom_call.1} parent=1 // pred_fallthru
      _
    %196 = vsyncpa [#allocation3], 1

</llo_original>
